<compile_context>
chip_gen: v7x
topology: tpu7x:2x2x1
jax: 0.10.0
libtpu: 0.0.40
codegen_flags: <defaults>
</compile_context>

<pallas_src>
import math

import jax
import jax.numpy as jnp
from jax.experimental import pallas as pl
from jax.experimental.pallas import tpu as pltpu


# ----------------------------------------------------------------------------
# Pallas kernel (single invocation, everything resident in VMEM):
#   residual = x
#   h   = relu(adj_blk @ (x @ W1) + b1)     (GraphConvolution 1, all L at once)
#   out = adj_blk @ (h @ W2) + b2           (GraphConvolution 2, all L at once)
#   y   = residual + out
# ----------------------------------------------------------------------------
def graphfunc_kernel(x_ref, adj_ref, w1_ref, b1_ref, w2_ref, b2_ref, o_ref):
    x = x_ref[...]                         # (L*N, D) f32 (kept f32 for residual)
    adj = adj_ref[...]                     # (L*N, L*N) bf16 block-diag adjacency
    xb = x.astype(jnp.bfloat16)

    # GC1: support = x @ W1 ; h = relu(adj @ support + b1)
    s1 = jnp.dot(xb, w1_ref[...], preferred_element_type=jnp.float32)          # (L*N, H)
    h = jnp.dot(adj, s1.astype(jnp.bfloat16),
                preferred_element_type=jnp.float32) + b1_ref[...]
    h = jnp.maximum(h, 0.0)

    # GC2: support = h @ W2 ; out = adj @ support + b2
    s2 = jnp.dot(h.astype(jnp.bfloat16), w2_ref[...],
                 preferred_element_type=jnp.float32)                           # (L*N, D)
    out = jnp.dot(adj, s2.astype(jnp.bfloat16),
                  preferred_element_type=jnp.float32) + b2_ref[...]

    o_ref[...] = x + out                   # residual connection, one f32 store


def graph_func_forward(x, adj, w1, b1, w2, b2):
    """x: (L, N, D) f32, adj: (N, N) f32 row-normalized, w1: (D, 4D), b1: (4D,),
    w2: (4D, D), b2: (D,).  Returns (L, N, D) f32."""
    L, N, D = x.shape
    H = w1.shape[1]                        # 4*D
    LN = L * N

    # Layout plumbing on the wrapper side (pure XLA, cheap):
    x2d = x.reshape(LN, D)
    # Block-diagonal adjacency: kron(I_L, adj).  Zeros contribute exactly 0 in
    # the f32 accumulation, so results match the per-set-element matmuls.
    adj_blk = jnp.kron(jnp.eye(L, dtype=jnp.float32), adj).astype(jnp.bfloat16)
    w1b = w1.astype(jnp.bfloat16)
    w2b = w2.astype(jnp.bfloat16)
    b1_2d = b1.reshape(1, H).astype(jnp.float32)
    b2_2d = b2.reshape(1, D).astype(jnp.float32)

    flops = 2 * LN * D * H + 2 * LN * LN * H + 2 * LN * H * D + 2 * LN * LN * D
    bytes_accessed = (x2d.size * 4 + adj_blk.size * 2 + w1b.size * 2
                      + w2b.size * 2 + b1_2d.size * 4 + b2_2d.size * 4
                      + LN * D * 4)

    out2d = pl.pallas_call(
        graphfunc_kernel,
        out_shape=jax.ShapeDtypeStruct((LN, D), jnp.float32),
        grid_spec=pltpu.PrefetchScalarGridSpec(
            num_scalar_prefetch=0,
            grid=(1,),                      # single invocation: no per-g pipeline overhead
            in_specs=[
                pl.BlockSpec((LN, D), lambda i: (0, 0)),     # x (all set elements)
                pl.BlockSpec((LN, LN), lambda i: (0, 0)),    # block-diag adjacency
                pl.BlockSpec((D, H), lambda i: (0, 0)),      # W1
                pl.BlockSpec((1, H), lambda i: (0, 0)),      # b1
                pl.BlockSpec((H, D), lambda i: (0, 0)),      # W2
                pl.BlockSpec((1, D), lambda i: (0, 0)),      # b2
            ],
            out_specs=pl.BlockSpec((LN, D), lambda i: (0, 0)),
        ),
        compiler_params=pltpu.CompilerParams(
            dimension_semantics=("arbitrary",)),
        cost_estimate=pl.CostEstimate(
            flops=flops, transcendentals=0, bytes_accessed=bytes_accessed),
    )(x2d, adj_blk, w1b, b1_2d, w2b, b2_2d)

    return out2d.reshape(L, N, D)


# ----------------------------------------------------------------------------
# Glue: dense equivalent of the scipy sparse adjacency construction.
# permutations() emits only i != j same-label pairs (no duplicates), the
# symmetrization is a no-op (already symmetric), and adding I before row
# normalization gives exactly:
#   adj[i, j] = [label[i] == label[j]] / |{k : label[k] == label[i]}|
# which also covers the "no multi-member class" fallback (reduces to I).
# ----------------------------------------------------------------------------
def build_normalized_adj(labels):
    same = (labels[:, None] == labels[None, :]).astype(jnp.float32)
    return same / jnp.sum(same, axis=1, keepdims=True)


def init_gcn_params(key, in_features, out_features):
    # mirrors GraphConvolution.reset_parameters: U(-stdv, stdv), stdv = 1/sqrt(out)
    stdv = 1.0 / math.sqrt(out_features)
    kw, kb = jax.random.split(key)
    w = jax.random.uniform(kw, (in_features, out_features), jnp.float32, -stdv, stdv)
    b = jax.random.uniform(kb, (out_features,), jnp.float32, -stdv, stdv)
    return w, b


if __name__ == "__main__":
    # Small shapes consistent with the forward: (set_length, set_size, z_dim)
    L, N, Z = 2, 8, 32
    H = Z * 4

    key = jax.random.PRNGKey(0)
    kx, kl, k1, k2 = jax.random.split(key, 4)

    x = jax.random.normal(kx, (L, N, Z), jnp.float32)
    graph_label = jax.random.randint(kl, (N,), 0, 3, jnp.int32)

    w1, b1 = init_gcn_params(k1, Z, H)      # gc1: z_dim -> 4*z_dim
    w2, b2 = init_gcn_params(k2, H, Z)      # gc2: 4*z_dim -> z_dim

    adj = build_normalized_adj(graph_label)

    out = graph_func_forward(x, adj, w1, b1, w2, b2)
    out = jax.block_until_ready(out)

    # plain-JAX reference mimicking kernel precision (bf16 matmul operands,
    # f32 accumulation / bias / relu / residual)
    bf = jnp.bfloat16
    adj_b, w1_b, w2_b = adj.astype(bf), w1.astype(bf), w2.astype(bf)

    def ref_one(xg):
        s1 = jnp.dot(xg.astype(bf), w1_b, preferred_element_type=jnp.float32)
        h = jnp.maximum(
            jnp.dot(adj_b, s1.astype(bf), preferred_element_type=jnp.float32) + b1, 0.0)
        s2 = jnp.dot(h.astype(bf), w2_b, preferred_element_type=jnp.float32)
        return xg + jnp.dot(adj_b, s2.astype(bf), preferred_element_type=jnp.float32) + b2

    ref = jax.vmap(ref_one)(x)
    assert out.shape == (L, N, Z)
    assert jnp.allclose(out, ref, atol=1e-2, rtol=1e-2), float(jnp.max(jnp.abs(out - ref)))

    print("KERNEL_OK")
</pallas_src>

<mosaic_0001>
module attributes {stable_mosaic.version = 11 : i64} {
  func.func @graphfunc_kernel(%arg0: i32, %arg1: memref<16x32xf32, #tpu.memory_space<vmem>>, %arg2: memref<16x16xbf16, #tpu.memory_space<vmem>>, %arg3: memref<32x128xbf16, #tpu.memory_space<vmem>>, %arg4: memref<1x128xf32, #tpu.memory_space<vmem>>, %arg5: memref<128x32xbf16, #tpu.memory_space<vmem>>, %arg6: memref<1x32xf32, #tpu.memory_space<vmem>>, %arg7: memref<16x32xf32, #tpu.memory_space<vmem>>) attributes {dimension_semantics = [#tpu.dimension_semantics<arbitrary>], iteration_bounds = array<i64: 1>, scalar_prefetch = 0 : i64, scratch_operands = 0 : i64, tpu.core_type = #tpu.core_type<tc>, window_params = [{pipeline_mode = #tpu.pipeline_mode<synchronous>, transform_indices = @transform_0, window_bounds = array<i64: 16, 32>}, {pipeline_mode = #tpu.pipeline_mode<synchronous>, transform_indices = @transform_1, window_bounds = array<i64: 16, 16>}, {pipeline_mode = #tpu.pipeline_mode<synchronous>, transform_indices = @transform_2, window_bounds = array<i64: 32, 128>}, {pipeline_mode = #tpu.pipeline_mode<synchronous>, transform_indices = @transform_3, window_bounds = array<i64: 1, 128>}, {pipeline_mode = #tpu.pipeline_mode<synchronous>, transform_indices = @transform_4, window_bounds = array<i64: 128, 32>}, {pipeline_mode = #tpu.pipeline_mode<synchronous>, transform_indices = @transform_5, window_bounds = array<i64: 1, 32>}, {pipeline_mode = #tpu.pipeline_mode<synchronous>, transform_indices = @transform_6, window_bounds = array<i64: 16, 32>}]} {
    %c0 = arith.constant 0 : index
    %c0_0 = arith.constant 0 : index
    %0 = vector.load %arg1[%c0, %c0_0] : memref<16x32xf32, #tpu.memory_space<vmem>>, vector<16x32xf32>
    %c0_1 = arith.constant 0 : index
    %c0_2 = arith.constant 0 : index
    %1 = vector.load %arg2[%c0_1, %c0_2] : memref<16x16xbf16, #tpu.memory_space<vmem>>, vector<16x16xbf16>
    %2 = arith.truncf %0 : vector<16x32xf32> to vector<16x32xbf16>
    %c0_3 = arith.constant 0 : index
    %c0_4 = arith.constant 0 : index
    %3 = vector.load %arg3[%c0_3, %c0_4] : memref<32x128xbf16, #tpu.memory_space<vmem>>, vector<32x128xbf16>
    %cst = arith.constant dense<0.000000e+00> : vector<16x128xf32>
    %4 = tpu.matmul %2, %3, %cst {dimension_numbers = #tpu.dot_dimension_numbers<[1], [0], [0], [1], [0, 0, 1, 1], [], []>} : vector<16x32xbf16>, vector<32x128xbf16>, vector<16x128xf32> -> vector<16x128xf32>
    %5 = arith.truncf %4 : vector<16x128xf32> to vector<16x128xbf16>
    %cst_5 = arith.constant dense<0.000000e+00> : vector<16x128xf32>
    %6 = tpu.matmul %1, %5, %cst_5 {dimension_numbers = #tpu.dot_dimension_numbers<[1], [0], [0], [1], [0, 0, 1, 1], [], []>} : vector<16x16xbf16>, vector<16x128xbf16>, vector<16x128xf32> -> vector<16x128xf32>
    %c0_6 = arith.constant 0 : index
    %c0_7 = arith.constant 0 : index
    %7 = vector.load %arg4[%c0_6, %c0_7] : memref<1x128xf32, #tpu.memory_space<vmem>>, vector<1x128xf32>
    %8 = vector.broadcast %7 : vector<1x128xf32> to vector<16x128xf32>
    %9 = arith.addf %6, %8 : vector<16x128xf32>
    %cst_8 = arith.constant 0.000000e+00 : f32
    %10 = vector.broadcast %cst_8 : f32 to vector<16x128xf32>
    %11 = arith.maximumf %9, %10 : vector<16x128xf32>
    %12 = arith.truncf %11 : vector<16x128xf32> to vector<16x128xbf16>
    %c0_9 = arith.constant 0 : index
    %c0_10 = arith.constant 0 : index
    %13 = vector.load %arg5[%c0_9, %c0_10] : memref<128x32xbf16, #tpu.memory_space<vmem>>, vector<128x32xbf16>
    %cst_11 = arith.constant dense<0.000000e+00> : vector<16x32xf32>
    %14 = tpu.matmul %12, %13, %cst_11 {dimension_numbers = #tpu.dot_dimension_numbers<[1], [0], [0], [1], [0, 0, 1, 1], [], []>} : vector<16x128xbf16>, vector<128x32xbf16>, vector<16x32xf32> -> vector<16x32xf32>
    %15 = arith.truncf %14 : vector<16x32xf32> to vector<16x32xbf16>
    %cst_12 = arith.constant dense<0.000000e+00> : vector<16x32xf32>
    %16 = tpu.matmul %1, %15, %cst_12 {dimension_numbers = #tpu.dot_dimension_numbers<[1], [0], [0], [1], [0, 0, 1, 1], [], []>} : vector<16x16xbf16>, vector<16x32xbf16>, vector<16x32xf32> -> vector<16x32xf32>
    %c0_13 = arith.constant 0 : index
    %c0_14 = arith.constant 0 : index
    %17 = vector.load %arg6[%c0_13, %c0_14] : memref<1x32xf32, #tpu.memory_space<vmem>>, vector<1x32xf32>
    %18 = vector.broadcast %17 : vector<1x32xf32> to vector<16x32xf32>
    %19 = arith.addf %16, %18 : vector<16x32xf32>
    %20 = arith.addf %0, %19 : vector<16x32xf32>
    %c0_15 = arith.constant 0 : index
    %c0_16 = arith.constant 0 : index
    %21 = vector.load %arg7[%c0_15, %c0_16] : memref<16x32xf32, #tpu.memory_space<vmem>>, vector<16x32xf32>
    tpu.vector_store %arg7[%c0_15, %c0_16], %20 {strides = array<i32>} : memref<16x32xf32, #tpu.memory_space<vmem>>, vector<16x32xf32>,
    return
  }
  func.func @transform_0(%arg0: i32) -> (i32, i32) {
    %c0_i32 = arith.constant 0 : i32
    %c0_i32_0 = arith.constant 0 : i32
    %c0_i32_1 = arith.constant 0 : i32
    return %c0_i32, %c0_i32_0 : i32, i32
  }
  func.func @transform_1(%arg0: i32) -> (i32, i32) {
    %c0_i32 = arith.constant 0 : i32
    %c0_i32_0 = arith.constant 0 : i32
    %c0_i32_1 = arith.constant 0 : i32
    return %c0_i32, %c0_i32_0 : i32, i32
  }
  func.func @transform_2(%arg0: i32) -> (i32, i32) {
    %c0_i32 = arith.constant 0 : i32
    %c0_i32_0 = arith.constant 0 : i32
    %c0_i32_1 = arith.constant 0 : i32
    return %c0_i32, %c0_i32_0 : i32, i32
  }
  func.func @transform_3(%arg0: i32) -> (i32, i32) {
    %c0_i32 = arith.constant 0 : i32
    %c0_i32_0 = arith.constant 0 : i32
    %c0_i32_1 = arith.constant 0 : i32
    return %c0_i32, %c0_i32_0 : i32, i32
  }
  func.func @transform_4(%arg0: i32) -> (i32, i32) {
    %c0_i32 = arith.constant 0 : i32
    %c0_i32_0 = arith.constant 0 : i32
    %c0_i32_1 = arith.constant 0 : i32
    return %c0_i32, %c0_i32_0 : i32, i32
  }
  func.func @transform_5(%arg0: i32) -> (i32, i32) {
    %c0_i32 = arith.constant 0 : i32
    %c0_i32_0 = arith.constant 0 : i32
    %c0_i32_1 = arith.constant 0 : i32
    return %c0_i32, %c0_i32_0 : i32, i32
  }
  func.func @transform_6(%arg0: i32) -> (i32, i32) {
    %c0_i32 = arith.constant 0 : i32
    %c0_i32_0 = arith.constant 0 : i32
    %c0_i32_1 = arith.constant 0 : i32
    return %c0_i32, %c0_i32_0 : i32, i32
  }
}

</mosaic_0001>

<llo_original>
// kernel: tpu_custom_call.1
$region0: #{tpu_custom_call.1}
  #allocation0 [shape = 'u32[]', space=smem, size = 0x4, offset = 0x4, fixed_abs, tag = 'smem constant byte address 0x4 - core index']
  #allocation1 [shape = 'u32[144,128]{1,0:T(1,128)}', space=vmem, size = 0x12000, scoped, tag = 'internal scratch']
  %s0 = inlined_call_operand.vmem [shape: f32[16,32], index: 0, kind: input, shape index: {}]
  %s1 = inlined_call_operand.vmem [shape: bf16[16,16], index: 1, kind: input, shape index: {}]
  %s2 = inlined_call_operand.vmem [shape: bf16[32,128], index: 2, kind: input, shape index: {}]
  %s3 = inlined_call_operand.vmem [shape: f32[1,128], index: 3, kind: input, shape index: {}]
  %s4 = inlined_call_operand.vmem [shape: bf16[128,32], index: 4, kind: input, shape index: {}]
  %s5 = inlined_call_operand.vmem [shape: f32[1,32], index: 5, kind: input, shape index: {}]
  %s6 = inlined_call_operand.hbm [shape: f32[16,32], index: 6, kind: output, shape index: {}]
  %s7 = sld [smem:[#allocation0]]
  $region34: #{tpu_custom_call.1} parent=0
    _
  %s9 = ssub.s32 1, %s7
  %s10 = scalar_select 0, %s9, %s7
  $region1: #{tpu_custom_call.1} parent=0
    #allocation2 [shape = 'u8[8192]{0}', space=vmem, size = 0x2000, scoped, tag = 'output window, operand 0, single buffered']
    #allocation3 [shape = 's32[1]{0}', space=sflag, size = 0x4, scoped, tag = 'scoped memory for tpu_custom_call.1']
    %11 = vsyncpa [#allocation3], 0
    // Predicated region
    $region2: #{tpu_custom_call.1} parent=1 // pred_check
      _
    $region3: #{tpu_custom_call.1} parent=1 // pred_check_branch
      %13 = sbr.rel (0) target = $region5
    $region4: #{tpu_custom_call.1} parent=1 // pred_region
      _
    $region5: #{tpu_custom_call.1} parent=1 // pred_fallthru
      _
    // Predicated region
    $region6: #{tpu_custom_call.1} parent=1 // pred_check
      _
    $region7: #{tpu_custom_call.1} parent=1 // pred_check_branch
      %15 = sbr.rel (0) target = $region9
    $region8: #{tpu_custom_call.1} parent=1 // pred_region
      _
    $region9: #{tpu_custom_call.1} parent=1 // pred_fallthru
      _
    // Predicated region
    $region10: #{tpu_custom_call.1} parent=1 // pred_check
      _
    $region11: #{tpu_custom_call.1} parent=1 // pred_check_branch
      %17 = sbr.rel (0) target = $region13
    $region12: #{tpu_custom_call.1} parent=1 // pred_region
      _
    $region13: #{tpu_custom_call.1} parent=1 // pred_fallthru
      _
    // Predicated region
    $region14: #{tpu_custom_call.1} parent=1 // pred_check
      _
    $region15: #{tpu_custom_call.1} parent=1 // pred_check_branch
      %19 = sbr.rel (0) target = $region17
    $region16: #{tpu_custom_call.1} parent=1 // pred_region
      _
    $region17: #{tpu_custom_call.1} parent=1 // pred_fallthru
      _
    // Predicated region
    $region18: #{tpu_custom_call.1} parent=1 // pred_check
      _
    $region19: #{tpu_custom_call.1} parent=1 // pred_check_branch
      %21 = sbr.rel (0) target = $region21
    $region20: #{tpu_custom_call.1} parent=1 // pred_region
      _
    $region21: #{tpu_custom_call.1} parent=1 // pred_fallthru
      _
    // Predicated region
    $region22: #{tpu_custom_call.1} parent=1 // pred_check
      _
    $region23: #{tpu_custom_call.1} parent=1 // pred_check_branch
      %23 = sbr.rel (0) target = $region25
    $region24: #{tpu_custom_call.1} parent=1 // pred_region
      _
    $region25: #{tpu_custom_call.1} parent=1 // pred_fallthru
      _
    %v25 = vld [vmem:[%s0] sm:$0xff]
    %v26 = vld [vmem:[%s0 + $0x8] sm:$0xff]
    %v27 = vld [vmem:[%s1] sm:$0xf]
    %v28 = vld [vmem:[%s1 + $0x4] sm:$0xf]
    %v29 = vpack.c.bf16 %v26, %v25
    %v30 = vld [vmem:[%s2] sm:$0xf]
    %v31 = vld [vmem:[%s2 + $0x4] sm:$0xf]
    %v32 = vld [vmem:[%s2 + $0x8] sm:$0xf]
    %v33 = vld [vmem:[%s2 + $0xc] sm:$0xf]
    %v38 = vunpack.c.l.b16 %v30
    %v39 = vunpack.c.l.b16 %v31
    %v40 = vunpack.c.l.b16 %v32
    %v41 = vunpack.c.l.b16 %v33
    %v42 = vpack.c.b16 %v39, %v38
    %v43 = vpack.c.b16 %v41, %v40
    %vm46 = vcmask 261120
    %v48 = vsel %vm46, %v29, 0
    %50 = vmatprep.subr.bf16.mxu0 0
    %51 = vmatpush1.bf16.msra.mxu0 %v42
    %52 = vmatprep.subr.bf16.mxu0 0
    %53 = vmatpush1.bf16.msra.mxu0 %v43
    %54 = vmatprep.subr.bf16.mxu0 0
    %55 = vmatpush1.bf16.msra.mxu0 0
    %56 = vmatprep.subr.bf16.mxu0 0
    %57 = vmatpush1.bf16.msra.mxu0 0
    %58 = vmatprep.subr.bf16.mxu0 0
    %59 = vmatpush1.bf16.msra.mxu0 0
    %60 = vmatprep.subr.bf16.mxu0 0
    %61 = vmatpush1.bf16.msra.mxu0 0
    %62 = vmatprep.subr.bf16.mxu0 0
    %63 = vmatpush1.bf16.msra.mxu0 0
    %64 = vmatprep.subr.bf16.mxu0 0
    %65 = vmatpush1.bf16.msra.mxu0 0
    %66 = vmatprep.subr.bf16.mxu0 0
    %67 = vmatpush1.bf16.msra.mxu0 0
    %68 = vmatprep.subr.bf16.mxu0 0
    %69 = vmatpush1.bf16.msra.mxu0 0
    %70 = vmatprep.subr.bf16.mxu0 0
    %71 = vmatpush1.bf16.msra.mxu0 0
    %72 = vmatprep.subr.bf16.mxu0 0
    %73 = vmatpush1.bf16.msra.mxu0 0
    %74 = vmatprep.subr.bf16.mxu0 0
    %75 = vmatpush1.bf16.msra.mxu0 0
    %76 = vmatprep.subr.bf16.mxu0 0
    %77 = vmatpush1.bf16.msra.mxu0 0
    %78 = vmatprep.subr.bf16.mxu0 0
    %79 = vmatpush1.bf16.msra.mxu0 0
    %80 = vmatprep.subr.bf16.mxu0 0
    %81 = vmatpush1.bf16.msra.mxu0 0
    %82 = vmatprep.mubr.bf16.mxu0 0
    %83 = vmatmul.mubr.bf16.gmra.mrb[0].mxu0 %v48
    %v84 = vpop.f32.mrb[0].mxu0
    %v85 = vadd.f32 0.0, %v84
    %v86 = vpop.f32.mrb[0].mxu0
    %v87 = vpop.f32.mrb[0].mxu0
    %v88 = vadd.f32 0.0, %v87
    %v89 = vpop.f32.mrb[0].mxu0
    %90 = vdwg.mxu0
    %v91 = vpack.c.bf16 %v88, %v85
    %v92 = vld [vmem:[%s3] sm:$0x1]
    %v94 = vlaneseq
    %v95 = vshrl.u32 %v94, 7
    %v96 = vsub.s32 0, %v95
    %v97 = vrot.slane %v92, %v96
    %v101 = vunpack.c.l.b16 %v27
    %v102 = vunpack.c.l.b16 %v28
    %v103 = vpack.c.b16 %v102, %v101
    %vm104 = vcmask 130048
    %v106 = vsel %vm104, %v103, 0
    %108 = vmatprep.subr.bf16.mxu0 0
    %109 = vmatpush1.bf16.msra.mxu0 %v91
    %110 = vmatprep.subr.bf16.mxu0 0
    %111 = vmatpush1.bf16.msra.mxu0 0
    %112 = vmatprep.subr.bf16.mxu0 0
    %113 = vmatpush1.bf16.msra.mxu0 0
    %114 = vmatprep.subr.bf16.mxu0 0
    %115 = vmatpush1.bf16.msra.mxu0 0
    %116 = vmatprep.subr.bf16.mxu0 0
    %117 = vmatpush1.bf16.msra.mxu0 0
    %118 = vmatprep.subr.bf16.mxu0 0
    %119 = vmatpush1.bf16.msra.mxu0 0
    %120 = vmatprep.subr.bf16.mxu0 0
    %121 = vmatpush1.bf16.msra.mxu0 0
    %122 = vmatprep.subr.bf16.mxu0 0
    %123 = vmatpush1.bf16.msra.mxu0 0
    %124 = vmatprep.subr.bf16.mxu0 0
    %125 = vmatpush1.bf16.msra.mxu0 0
    %126 = vmatprep.subr.bf16.mxu0 0
    %127 = vmatpush1.bf16.msra.mxu0 0
    %128 = vmatprep.subr.bf16.mxu0 0
    %129 = vmatpush1.bf16.msra.mxu0 0
    %130 = vmatprep.subr.bf16.mxu0 0
    %131 = vmatpush1.bf16.msra.mxu0 0
    %132 = vmatprep.subr.bf16.mxu0 0
    %133 = vmatpush1.bf16.msra.mxu0 0
    %134 = vmatprep.subr.bf16.mxu0 0
    %135 = vmatpush1.bf16.msra.mxu0 0
    %136 = vmatprep.subr.bf16.mxu0 0
    %137 = vmatpush1.bf16.msra.mxu0 0
    %138 = vmatprep.subr.bf16.mxu0 0
    %139 = vmatpush1.bf16.msra.mxu0 0
    %140 = vmatprep.mubr.bf16.mxu0 0
    %141 = vmatmul.mubr.bf16.gmra.mrb[0].mxu0 %v106
    %v142 = vpop.f32.mrb[0].mxu0
    %v143 = vadd.f32 %v97, %v142
    %v144 = vpop.f32.mrb[0].mxu0
    %v145 = vpop.f32.mrb[0].mxu0
    %v146 = vadd.f32 %v97, %v145
    %v147 = vpop.f32.mrb[0].mxu0
    %148 = vdwg.mxu0
    %v149 = vmax.f32 %v143, 0.0
    %v150 = vmax.f32 %v146, 0.0
    %v151 = vpack.c.bf16 %v150, %v149
    %v152 = vld [vmem:[%s4] sm:$0xf]
    %v153 = vld [vmem:[%s4 + $0x4] sm:$0xf]
    %v154 = vld [vmem:[%s4 + $0x8] sm:$0xf]
    %v155 = vld [vmem:[%s4 + $0xc] sm:$0xf]
    %v156 = vld [vmem:[%s4 + $0x10] sm:$0xf]
    %v157 = vld [vmem:[%s4 + $0x14] sm:$0xf]
    %v158 = vld [vmem:[%s4 + $0x18] sm:$0xf]
    %v159 = vld [vmem:[%s4 + $0x1c] sm:$0xf]
    %v160 = vld [vmem:[%s4 + $0x20] sm:$0xf]
    %v161 = vld [vmem:[%s4 + $0x24] sm:$0xf]
    %v162 = vld [vmem:[%s4 + $0x28] sm:$0xf]
    %v163 = vld [vmem:[%s4 + $0x2c] sm:$0xf]
    %v164 = vld [vmem:[%s4 + $0x30] sm:$0xf]
    %v165 = vld [vmem:[%s4 + $0x34] sm:$0xf]
    %v166 = vld [vmem:[%s4 + $0x38] sm:$0xf]
    %v167 = vld [vmem:[%s4 + $0x3c] sm:$0xf]
    %v184 = vunpack.c.l.b16 %v152
    %v185 = vunpack.c.l.b16 %v153
    %v186 = vunpack.c.l.b16 %v154
    %v187 = vunpack.c.l.b16 %v155
    %v188 = vunpack.c.l.b16 %v156
    %v189 = vunpack.c.l.b16 %v157
    %v190 = vunpack.c.l.b16 %v158
    %v191 = vunpack.c.l.b16 %v159
    %v192 = vunpack.c.l.b16 %v160
    %v193 = vunpack.c.l.b16 %v161
    %v194 = vunpack.c.l.b16 %v162
    %v195 = vunpack.c.l.b16 %v163
    %v196 = vunpack.c.l.b16 %v164
    %v197 = vunpack.c.l.b16 %v165
    %v198 = vunpack.c.l.b16 %v166
    %v199 = vunpack.c.l.b16 %v167
    %v200 = vpack.c.b16 %v185, %v184
    %v201 = vpack.c.b16 %v187, %v186
    %v202 = vpack.c.b16 %v189, %v188
    %v203 = vpack.c.b16 %v191, %v190
    %v204 = vpack.c.b16 %v193, %v192
    %v205 = vpack.c.b16 %v195, %v194
    %v206 = vpack.c.b16 %v197, %v196
    %v207 = vpack.c.b16 %v199, %v198
    %216 = vmatprep.subr.bf16.mxu0 0
    %217 = vmatpush1.bf16.msra.mxu0 %v200
    %218 = vmatprep.subr.bf16.mxu0 0
    %219 = vmatpush1.bf16.msra.mxu0 %v201
    %220 = vmatprep.subr.bf16.mxu0 0
    %221 = vmatpush1.bf16.msra.mxu0 %v202
    %222 = vmatprep.subr.bf16.mxu0 0
    %223 = vmatpush1.bf16.msra.mxu0 %v203
    %224 = vmatprep.subr.bf16.mxu0 0
    %225 = vmatpush1.bf16.msra.mxu0 %v204
    %226 = vmatprep.subr.bf16.mxu0 0
    %227 = vmatpush1.bf16.msra.mxu0 %v205
    %228 = vmatprep.subr.bf16.mxu0 0
    %229 = vmatpush1.bf16.msra.mxu0 %v206
    %230 = vmatprep.subr.bf16.mxu0 0
    %231 = vmatpush1.bf16.msra.mxu0 %v207
    %232 = vmatprep.subr.bf16.mxu0 0
    %233 = vmatpush1.bf16.msra.mxu0 0
    %234 = vmatprep.subr.bf16.mxu0 0
    %235 = vmatpush1.bf16.msra.mxu0 0
    %236 = vmatprep.subr.bf16.mxu0 0
    %237 = vmatpush1.bf16.msra.mxu0 0
    %238 = vmatprep.subr.bf16.mxu0 0
    %239 = vmatpush1.bf16.msra.mxu0 0
    %240 = vmatprep.subr.bf16.mxu0 0
    %241 = vmatpush1.bf16.msra.mxu0 0
    %242 = vmatprep.subr.bf16.mxu0 0
    %243 = vmatpush1.bf16.msra.mxu0 0
    %244 = vmatprep.subr.bf16.mxu0 0
    %245 = vmatpush1.bf16.msra.mxu0 0
    %246 = vmatprep.subr.bf16.mxu0 0
    %247 = vmatpush1.bf16.msra.mxu0 0
    %248 = vmatprep.mubr.bf16.mxu0 0
    %249 = vmatmul.mubr.bf16.gmra.mrb[0].mxu0 %v151
    %v250 = vpop.f32.mrb[0].mxu0
    %v251 = vadd.f32 0.0, %v250
    %v252 = vpop.f32.mrb[0].mxu0
    %v253 = vpop.f32.mrb[0].mxu0
    %v254 = vadd.f32 0.0, %v253
    %v255 = vpop.f32.mrb[0].mxu0
    %256 = vdwg.mxu0
    %v257 = vpack.c.bf16 %v254, %v251
    %v258 = vld [vmem:[%s5] sm:$0x1]
    %v260 = vlaneseq
    %v261 = vshrl.u32 %v260, 7
    %v262 = vsub.s32 0, %v261
    %v263 = vrot.slane %v258, %v262
    %265 = vmatprep.subr.bf16.mxu0 0
    %266 = vmatpush1.bf16.msra.mxu0 %v257
    %267 = vmatprep.subr.bf16.mxu0 0
    %268 = vmatpush1.bf16.msra.mxu0 0
    %269 = vmatprep.subr.bf16.mxu0 0
    %270 = vmatpush1.bf16.msra.mxu0 0
    %271 = vmatprep.subr.bf16.mxu0 0
    %272 = vmatpush1.bf16.msra.mxu0 0
    %273 = vmatprep.subr.bf16.mxu0 0
    %274 = vmatpush1.bf16.msra.mxu0 0
    %275 = vmatprep.subr.bf16.mxu0 0
    %276 = vmatpush1.bf16.msra.mxu0 0
    %277 = vmatprep.subr.bf16.mxu0 0
    %278 = vmatpush1.bf16.msra.mxu0 0
    %279 = vmatprep.subr.bf16.mxu0 0
    %280 = vmatpush1.bf16.msra.mxu0 0
    %281 = vmatprep.subr.bf16.mxu0 0
    %282 = vmatpush1.bf16.msra.mxu0 0
    %283 = vmatprep.subr.bf16.mxu0 0
    %284 = vmatpush1.bf16.msra.mxu0 0
    %285 = vmatprep.subr.bf16.mxu0 0
    %286 = vmatpush1.bf16.msra.mxu0 0
    %287 = vmatprep.subr.bf16.mxu0 0
    %288 = vmatpush1.bf16.msra.mxu0 0
    %289 = vmatprep.subr.bf16.mxu0 0
    %290 = vmatpush1.bf16.msra.mxu0 0
    %291 = vmatprep.subr.bf16.mxu0 0
    %292 = vmatpush1.bf16.msra.mxu0 0
    %293 = vmatprep.subr.bf16.mxu0 0
    %294 = vmatpush1.bf16.msra.mxu0 0
    %295 = vmatprep.subr.bf16.mxu0 0
    %296 = vmatpush1.bf16.msra.mxu0 0
    %297 = vmatprep.mubr.bf16.mxu0 0
    %298 = vmatmul.mubr.bf16.gmra.mrb[0].mxu0 %v106
    %v299 = vpop.f32.mrb[0].mxu0
    %v300 = vadd.f32 %v263, %v299
    %v301 = vpop.f32.mrb[0].mxu0
    %v302 = vpop.f32.mrb[0].mxu0
    %v303 = vadd.f32 %v263, %v302
    %v304 = vpop.f32.mrb[0].mxu0
    %305 = vdwg.mxu0
    %v306 = vadd.f32 %v25, %v300
    %v307 = vadd.f32 %v26, %v303
    %308 = vst.msk [vmem:[#allocation2] sm:$0xff] %vm46, %v306
    %309 = vst.msk [vmem:[#allocation2 + $0x8] sm:$0xff] %vm46, %v307
    // Predicated region
    $region26: #{tpu_custom_call.1} parent=1 // pred_check
      _
    $region27: #{tpu_custom_call.1} parent=1 // pred_check_branch
      %311 = sbr.rel (0) target = $region29
    $region28: #{tpu_custom_call.1} parent=1 // pred_region
      %s313 = ssub.s32 256, 256
      %314 = vsyncadd [#allocation3], %s313
      %s315 = sshll.u32 [#allocation2], 4
      %s316 = int_to_ptr.vmem [resolvable:$true] %s315
      %321 = dma.vmem_to_hbm [thread:$0]  %s316, 256, %s6, [#allocation3], 128, 128, 8
    $region29: #{tpu_custom_call.1} parent=1 // pred_fallthru
      _
    // Predicated region
    $region30: #{tpu_custom_call.1} parent=1 // pred_check
      _
    $region31: #{tpu_custom_call.1} parent=1 // pred_check_branch
      %323 = sbr.rel (0) target = $region33
    $region32: #{tpu_custom_call.1} parent=1 // pred_region
      %324 = dma.done [#allocation3], 256
    $region33: #{tpu_custom_call.1} parent=1 // pred_fallthru
      _
    %325 = vsyncpa [#allocation3], 1

</llo_original>
